<compile_context>
chip_gen: v5e
topology: v5e:2x2
jax: 0.10.0
libtpu: 0.0.40
codegen_flags: <defaults>
</compile_context>

<pallas_src>
import functools
from typing import NamedTuple

import jax
import jax.numpy as jnp
from jax.experimental import pallas as pl
from jax.experimental.pallas import tpu as pltpu


def _round_up(n, m):
    return (n + m - 1) // m * m


def _vmem_capacity_bytes():
    """Generation-aware VMEM capacity; conservative (v7x-sized) fallback."""
    try:
        return int(pltpu.get_tpu_info().vmem_capacity_bytes)
    except Exception:
        return 64 * 1024 * 1024


class PackedZoneoutLSTMParams(NamedTuple):
    """Gate-blocked, lane-padded LSTMCell parameters.  Pack ONCE at init."""
    wx: jax.Array        # (Dp, 4*Hp)  W_ih^T, gate g in cols [g*Hp, g*Hp + H)
    wh: jax.Array        # (Hp, 4*Hp)  W_hh^T, same gate blocking
    bias: jax.Array      # (1, 4*Hp) f32, b_ih + b_hh, same gate blocking
    input_size: int
    hidden_size: int


def pack_zoneout_lstm_params(w_ih, w_hh, b_ih, b_hh,
                             *, matmul_dtype=jnp.bfloat16):
    """Fuse + transpose + gate-block-pad nn.LSTMCell parameters.

    w_ih: (4H, D), w_hh: (4H, H), biases (4H,)  (gates [i|f|g|o]).
    Call this once at parameter init and reuse the result every step.
    Pass matmul_dtype=jnp.float32 for bit-exactness-sensitive users.
    """
    H4, D = w_ih.shape
    H = H4 // 4
    assert w_ih.shape == (4 * H, D)
    assert w_hh.shape == (4 * H, H)
    Dp = _round_up(D, 128)
    Hp = _round_up(H, 128)

    def gate_block(w, in_dim, in_pad):
        # (4H, in) -> (in_pad, 4*Hp) with gate g in columns [g*Hp, g*Hp + H).
        w4 = w.astype(jnp.float32).reshape(4, H, in_dim)
        w4 = jnp.transpose(w4, (2, 0, 1))                     # (in, 4, H)
        w4 = jnp.pad(w4, ((0, in_pad - in_dim), (0, 0), (0, Hp - H)))
        return w4.reshape(in_pad, 4 * Hp).astype(matmul_dtype)

    wx = gate_block(w_ih, D, Dp)
    wh = gate_block(w_hh, H, Hp)
    b = (b_ih + b_hh).astype(jnp.float32).reshape(4, H)
    b = jnp.pad(b, ((0, 0), (0, Hp - H))).reshape(1, 4 * Hp)
    return PackedZoneoutLSTMParams(wx, wh, b, D, H)


def _zoneout_lstm_kernel(zp_ref, x_ref, h_ref, c_ref, wx_ref, wh_ref, b_ref,
                         h_out_ref, c_out_ref, *, hp):
    """One batch tile: per-gate (matmul -> bias -> activation) interleave,
    cell update, eval-mode zoneout interpolation."""
    p = zp_ref[0]                                   # runtime zoneout prob

    x = x_ref[...]                                  # (TB, Dp) matmul dtype
    prev_h = h_ref[...]                             # (TB, Hp) f32 (zoneout path)
    prev_c = c_ref[...]                             # (TB, Hp) f32
    h_mm = prev_h.astype(x.dtype)                   # MXU operand (bf16 default)

    def gate_pre(g):
        # Two accumulating MXU dots (K split into Dp and Hp), f32 accumulator;
        # gate column blocks are lane-aligned (hp is a multiple of 128).
        acc = jnp.dot(x, wx_ref[:, g * hp:(g + 1) * hp],
                      preferred_element_type=jnp.float32)
        acc = acc + jnp.dot(h_mm, wh_ref[:, g * hp:(g + 1) * hp],
                            preferred_element_type=jnp.float32)
        return acc + b_ref[:, g * hp:(g + 1) * hp]

    def sigmoid(v):
        # Single-tanh logistic: one EUP op per element instead of exp + divide.
        return 0.5 * (jnp.tanh(0.5 * v) + 1.0)

    # Per-gate interleave: activation of gate g overlaps the MXU push of g+1
    # and keeps only ~2 gate-sized f32 intermediates live at a time.
    i_g = sigmoid(gate_pre(0))
    f_g = sigmoid(gate_pre(1))
    c_new = f_g * prev_c + i_g * jnp.tanh(gate_pre(2))
    h_new = sigmoid(gate_pre(3)) * jnp.tanh(c_new)

    # Eval-mode zoneout: deterministic interpolation with the previous state.
    q = 1.0 - p
    h_out_ref[...] = (q * h_new + p * prev_h).astype(h_out_ref.dtype)
    c_out_ref[...] = (q * c_new + p * prev_c).astype(c_out_ref.dtype)


def zoneout_lstm_cell(x, prev_hc, params: PackedZoneoutLSTMParams,
                      *, zoneout_prob=0.1):
    """Eval-mode ZoneoutLSTMCell forward. Returns (h, c) in float32."""
    B, D = x.shape
    H = params.hidden_size
    assert D == params.input_size
    Dp = params.wx.shape[0]
    Hp = params.wh.shape[0]
    mm_dtype = params.wx.dtype
    mm_bytes = jnp.dtype(mm_dtype).itemsize

    if prev_hc is None:
        prev_h = jnp.zeros((B, H), jnp.float32)
        prev_c = jnp.zeros((B, H), jnp.float32)
    else:
        prev_h, prev_c = prev_hc
        prev_h = prev_h.astype(jnp.float32)
        prev_c = prev_c.astype(jnp.float32)

    # --- generation-aware VMEM budgeting & batch-tile selection -------------
    vmem_cap = _vmem_capacity_bytes()
    vmem_budget = int(0.75 * vmem_cap)              # leave compiler headroom
    weight_bytes = (Dp + Hp) * 4 * Hp * mm_bytes + 4 * Hp * 4  # single-buffered

    def tile_bytes(tb):
        streamed = tb * Dp * mm_bytes + 4 * tb * Hp * 4   # x, prev_h/c, h/c out
        gate_live = 4 * tb * Hp * 4                       # live f32 gate temps
        return 2 * streamed + gate_live                   # streamed double-buf

    Bp8 = _round_up(B, 8)
    TB = min(Bp8, 512)                              # amortize per-step overhead
    if TB > 128:
        TB = (TB // 128) * 128                      # full-height MXU passes
    while TB > 8 and weight_bytes + tile_bytes(TB) > vmem_budget:
        TB = max(8, _round_up(TB // 2, 8))
    Bp = _round_up(Bp8, TB)
    num_b_tiles = Bp // TB

    vmem_est = weight_bytes + tile_bytes(TB)
    vmem_limit = int(min(max(vmem_est + (4 << 20), 32 << 20), vmem_budget))

    # --- padded streamed operands (no fused xh materialization) -------------
    x_pad = jnp.zeros((Bp, Dp), mm_dtype).at[:B, :D].set(x.astype(mm_dtype))
    h_pad = jnp.zeros((Bp, Hp), jnp.float32).at[:B, :H].set(prev_h)
    c_pad = jnp.zeros((Bp, Hp), jnp.float32).at[:B, :H].set(prev_c)
    zp = jnp.full((1,), zoneout_prob, jnp.float32)  # runtime scalar, no recompile

    kernel = functools.partial(_zoneout_lstm_kernel, hp=Hp)

    h_out, c_out = pl.pallas_call(
        kernel,
        out_shape=(
            jax.ShapeDtypeStruct((Bp, Hp), jnp.float32),
            jax.ShapeDtypeStruct((Bp, Hp), jnp.float32),
        ),
        grid=(num_b_tiles,),
        in_specs=[
            pl.BlockSpec(memory_space=pltpu.MemorySpace.SMEM),   # zoneout prob
            pl.BlockSpec((TB, Dp), lambda b: (b, 0)),            # x tile
            pl.BlockSpec((TB, Hp), lambda b: (b, 0)),            # prev_h (f32)
            pl.BlockSpec((TB, Hp), lambda b: (b, 0)),            # prev_c (f32)
            pl.BlockSpec((Dp, 4 * Hp), lambda b: (0, 0),         # W_ih^T blocked
                         pipeline_mode=pl.Buffered(1)),
            pl.BlockSpec((Hp, 4 * Hp), lambda b: (0, 0),         # W_hh^T blocked
                         pipeline_mode=pl.Buffered(1)),
            pl.BlockSpec((1, 4 * Hp), lambda b: (0, 0),          # fused bias
                         pipeline_mode=pl.Buffered(1)),
        ],
        out_specs=(
            pl.BlockSpec((TB, Hp), lambda b: (b, 0)),
            pl.BlockSpec((TB, Hp), lambda b: (b, 0)),
        ),
        compiler_params=pltpu.CompilerParams(
            dimension_semantics=("parallel",),
            vmem_limit_bytes=vmem_limit,
        ),
    )(zp, x_pad, h_pad, c_pad, params.wx, params.wh, params.bias)

    return h_out[:B, :H], c_out[:B, :H]


def _reference(x, prev_h, prev_c, w_ih, w_hh, b_ih, b_hh, p, matmul_dtype):
    """Pure-JAX reference mirroring the PyTorch module (eval mode), with the
    same bf16 rounding applied to the matmul operands as the kernel."""
    f32 = jnp.float32
    H = prev_h.shape[1]
    xm = x.astype(matmul_dtype).astype(f32)
    hm = prev_h.astype(matmul_dtype).astype(f32)
    wi = w_ih.astype(matmul_dtype).astype(f32)
    wh = w_hh.astype(matmul_dtype).astype(f32)
    gates = xm @ wi.T + hm @ wh.T + b_ih + b_hh
    i_g = jax.nn.sigmoid(gates[:, 0 * H:1 * H])
    f_g = jax.nn.sigmoid(gates[:, 1 * H:2 * H])
    g_g = jnp.tanh(gates[:, 2 * H:3 * H])
    o_g = jax.nn.sigmoid(gates[:, 3 * H:4 * H])
    c_new = f_g * prev_c + i_g * g_g
    h_new = o_g * jnp.tanh(c_new)
    h = (1.0 - p) * h_new + p * prev_h
    c = (1.0 - p) * c_new + p * prev_c
    return h, c


if __name__ == "__main__":
    B, D, H = 8, 16, 32
    zoneout_prob = 0.1

    key = jax.random.PRNGKey(0)
    k_x, k_h, k_c, k_wih, k_whh, k_bih, k_bhh = jax.random.split(key, 7)

    x = jax.random.normal(k_x, (B, D), dtype=jnp.float32)
    prev_h = jax.random.normal(k_h, (B, H), dtype=jnp.float32)
    prev_c = jax.random.normal(k_c, (B, H), dtype=jnp.float32)

    # Deterministic "PyTorch-like" parameter init (uniform in +-1/sqrt(H)),
    # stored in nn.LSTMCell layout (4H, D) / (4H, H), gates [i|f|g|o].
    bound = 1.0 / jnp.sqrt(jnp.float32(H))
    w_ih = jax.random.uniform(k_wih, (4 * H, D), jnp.float32, -bound, bound)
    w_hh = jax.random.uniform(k_whh, (4 * H, H), jnp.float32, -bound, bound)
    b_ih = jax.random.uniform(k_bih, (4 * H,), jnp.float32, -bound, bound)
    b_hh = jax.random.uniform(k_bhh, (4 * H,), jnp.float32, -bound, bound)
    # ZoneoutLSTMCell.__init__: forget-gate biases filled with 1.0
    b_ih = b_ih.at[H:2 * H].set(1.0)
    b_hh = b_hh.at[H:2 * H].set(1.0)

    # Pack once at "parameter init" (hoisted out of the per-step path).
    packed = pack_zoneout_lstm_params(w_ih, w_hh, b_ih, b_hh,
                                      matmul_dtype=jnp.bfloat16)

    h_out, c_out = zoneout_lstm_cell(x, (prev_h, prev_c), packed,
                                     zoneout_prob=zoneout_prob)
    jax.block_until_ready((h_out, c_out))

    h_ref, c_ref = _reference(x, prev_h, prev_c, w_ih, w_hh, b_ih, b_hh,
                              zoneout_prob, jnp.bfloat16)
    assert h_out.shape == (B, H) and c_out.shape == (B, H)
    assert jnp.allclose(h_out, h_ref, atol=1e-4, rtol=1e-4)
    assert jnp.allclose(c_out, c_ref, atol=1e-4, rtol=1e-4)

    # Also exercise the prev_hc=None (zero-state) path of the module.
    h0, c0 = zoneout_lstm_cell(x, None, packed, zoneout_prob=zoneout_prob)
    jax.block_until_ready((h0, c0))
    h0_ref, c0_ref = _reference(x, jnp.zeros((B, H)), jnp.zeros((B, H)),
                                w_ih, w_hh, b_ih, b_hh, zoneout_prob,
                                jnp.bfloat16)
    assert jnp.allclose(h0, h0_ref, atol=1e-4, rtol=1e-4)
    assert jnp.allclose(c0, c0_ref, atol=1e-4, rtol=1e-4)

    print("KERNEL_OK")
</pallas_src>

<mosaic_0001>
module attributes {stable_mosaic.version = 11 : i64} {
  func.func @_zoneout_lstm_kernel(%arg0: i32, %arg1: memref<1xf32, #tpu.memory_space<smem>>, %arg2: memref<8x128xbf16, #tpu.memory_space<vmem>>, %arg3: memref<8x128xf32, #tpu.memory_space<vmem>>, %arg4: memref<8x128xf32, #tpu.memory_space<vmem>>, %arg5: memref<128x512xbf16, #tpu.memory_space<vmem>>, %arg6: memref<128x512xbf16, #tpu.memory_space<vmem>>, %arg7: memref<1x512xf32, #tpu.memory_space<vmem>>, %arg8: memref<8x128xf32, #tpu.memory_space<vmem>>, %arg9: memref<8x128xf32, #tpu.memory_space<vmem>>) attributes {dimension_semantics = [#tpu.dimension_semantics<parallel>], iteration_bounds = array<i64: 1>, scalar_prefetch = 0 : i64, scratch_operands = 0 : i64, tpu.core_type = #tpu.core_type<tc>, window_params = [{transform_indices = @transform_0, window_bounds = array<i64: 1>}, {transform_indices = @transform_1, window_bounds = array<i64: 8, 128>}, {transform_indices = @transform_2, window_bounds = array<i64: 8, 128>}, {transform_indices = @transform_3, window_bounds = array<i64: 8, 128>}, {pipeline_mode = #tpu.pipeline_mode<synchronous>, transform_indices = @transform_4, window_bounds = array<i64: 128, 512>}, {pipeline_mode = #tpu.pipeline_mode<synchronous>, transform_indices = @transform_5, window_bounds = array<i64: 128, 512>}, {pipeline_mode = #tpu.pipeline_mode<synchronous>, transform_indices = @transform_6, window_bounds = array<i64: 1, 512>}, {transform_indices = @transform_7, window_bounds = array<i64: 8, 128>}, {transform_indices = @transform_8, window_bounds = array<i64: 8, 128>}]} {
    %c0 = arith.constant 0 : index
    %0 = memref.load %arg1[%c0] : memref<1xf32, #tpu.memory_space<smem>>
    %c0_0 = arith.constant 0 : index
    %c0_1 = arith.constant 0 : index
    %1 = vector.load %arg2[%c0_0, %c0_1] : memref<8x128xbf16, #tpu.memory_space<vmem>>, vector<8x128xbf16>
    %c0_2 = arith.constant 0 : index
    %c0_3 = arith.constant 0 : index
    %2 = vector.load %arg3[%c0_2, %c0_3] : memref<8x128xf32, #tpu.memory_space<vmem>>, vector<8x128xf32>
    %c0_4 = arith.constant 0 : index
    %c0_5 = arith.constant 0 : index
    %3 = vector.load %arg4[%c0_4, %c0_5] : memref<8x128xf32, #tpu.memory_space<vmem>>, vector<8x128xf32>
    %4 = arith.truncf %2 : vector<8x128xf32> to vector<8x128xbf16>
    %c0_6 = arith.constant 0 : index
    %c0_7 = arith.constant 0 : index
    %5 = vector.load %arg5[%c0_6, %c0_7] : memref<128x512xbf16, #tpu.memory_space<vmem>>, vector<128x128xbf16>
    %cst = arith.constant dense<0.000000e+00> : vector<8x128xf32>
    %6 = tpu.matmul %1, %5, %cst {dimension_numbers = #tpu.dot_dimension_numbers<[1], [0], [0], [1], [0, 0, 1, 1], [], []>} : vector<8x128xbf16>, vector<128x128xbf16>, vector<8x128xf32> -> vector<8x128xf32>
    %c0_8 = arith.constant 0 : index
    %c0_9 = arith.constant 0 : index
    %7 = vector.load %arg6[%c0_8, %c0_9] : memref<128x512xbf16, #tpu.memory_space<vmem>>, vector<128x128xbf16>
    %cst_10 = arith.constant dense<0.000000e+00> : vector<8x128xf32>
    %8 = tpu.matmul %4, %7, %cst_10 {dimension_numbers = #tpu.dot_dimension_numbers<[1], [0], [0], [1], [0, 0, 1, 1], [], []>} : vector<8x128xbf16>, vector<128x128xbf16>, vector<8x128xf32> -> vector<8x128xf32>
    %9 = arith.addf %6, %8 : vector<8x128xf32>
    %c0_11 = arith.constant 0 : index
    %c0_12 = arith.constant 0 : index
    %10 = vector.load %arg7[%c0_11, %c0_12] : memref<1x512xf32, #tpu.memory_space<vmem>>, vector<1x128xf32>
    %11 = vector.broadcast %10 : vector<1x128xf32> to vector<8x128xf32>
    %12 = arith.addf %9, %11 : vector<8x128xf32>
    %cst_13 = arith.constant 5.000000e-01 : f32
    %13 = vector.broadcast %cst_13 : f32 to vector<8x128xf32>
    %14 = arith.mulf %13, %12 : vector<8x128xf32>
    %15 = math.tanh %14 : vector<8x128xf32>
    %cst_14 = arith.constant 1.000000e+00 : f32
    %16 = vector.broadcast %cst_14 : f32 to vector<8x128xf32>
    %17 = arith.addf %15, %16 : vector<8x128xf32>
    %cst_15 = arith.constant 5.000000e-01 : f32
    %18 = vector.broadcast %cst_15 : f32 to vector<8x128xf32>
    %19 = arith.mulf %18, %17 : vector<8x128xf32>
    %c0_16 = arith.constant 0 : index
    %c128 = arith.constant 128 : index
    %20 = vector.load %arg5[%c0_16, %c128] : memref<128x512xbf16, #tpu.memory_space<vmem>>, vector<128x128xbf16>
    %cst_17 = arith.constant dense<0.000000e+00> : vector<8x128xf32>
    %21 = tpu.matmul %1, %20, %cst_17 {dimension_numbers = #tpu.dot_dimension_numbers<[1], [0], [0], [1], [0, 0, 1, 1], [], []>} : vector<8x128xbf16>, vector<128x128xbf16>, vector<8x128xf32> -> vector<8x128xf32>
    %c0_18 = arith.constant 0 : index
    %c128_19 = arith.constant 128 : index
    %22 = vector.load %arg6[%c0_18, %c128_19] : memref<128x512xbf16, #tpu.memory_space<vmem>>, vector<128x128xbf16>
    %cst_20 = arith.constant dense<0.000000e+00> : vector<8x128xf32>
    %23 = tpu.matmul %4, %22, %cst_20 {dimension_numbers = #tpu.dot_dimension_numbers<[1], [0], [0], [1], [0, 0, 1, 1], [], []>} : vector<8x128xbf16>, vector<128x128xbf16>, vector<8x128xf32> -> vector<8x128xf32>
    %24 = arith.addf %21, %23 : vector<8x128xf32>
    %c0_21 = arith.constant 0 : index
    %c128_22 = arith.constant 128 : index
    %25 = vector.load %arg7[%c0_21, %c128_22] : memref<1x512xf32, #tpu.memory_space<vmem>>, vector<1x128xf32>
    %26 = vector.broadcast %25 : vector<1x128xf32> to vector<8x128xf32>
    %27 = arith.addf %24, %26 : vector<8x128xf32>
    %cst_23 = arith.constant 5.000000e-01 : f32
    %28 = vector.broadcast %cst_23 : f32 to vector<8x128xf32>
    %29 = arith.mulf %28, %27 : vector<8x128xf32>
    %30 = math.tanh %29 : vector<8x128xf32>
    %cst_24 = arith.constant 1.000000e+00 : f32
    %31 = vector.broadcast %cst_24 : f32 to vector<8x128xf32>
    %32 = arith.addf %30, %31 : vector<8x128xf32>
    %cst_25 = arith.constant 5.000000e-01 : f32
    %33 = vector.broadcast %cst_25 : f32 to vector<8x128xf32>
    %34 = arith.mulf %33, %32 : vector<8x128xf32>
    %35 = arith.mulf %34, %3 : vector<8x128xf32>
    %c0_26 = arith.constant 0 : index
    %c256 = arith.constant 256 : index
    %36 = vector.load %arg5[%c0_26, %c256] : memref<128x512xbf16, #tpu.memory_space<vmem>>, vector<128x128xbf16>
    %cst_27 = arith.constant dense<0.000000e+00> : vector<8x128xf32>
    %37 = tpu.matmul %1, %36, %cst_27 {dimension_numbers = #tpu.dot_dimension_numbers<[1], [0], [0], [1], [0, 0, 1, 1], [], []>} : vector<8x128xbf16>, vector<128x128xbf16>, vector<8x128xf32> -> vector<8x128xf32>
    %c0_28 = arith.constant 0 : index
    %c256_29 = arith.constant 256 : index
    %38 = vector.load %arg6[%c0_28, %c256_29] : memref<128x512xbf16, #tpu.memory_space<vmem>>, vector<128x128xbf16>
    %cst_30 = arith.constant dense<0.000000e+00> : vector<8x128xf32>
    %39 = tpu.matmul %4, %38, %cst_30 {dimension_numbers = #tpu.dot_dimension_numbers<[1], [0], [0], [1], [0, 0, 1, 1], [], []>} : vector<8x128xbf16>, vector<128x128xbf16>, vector<8x128xf32> -> vector<8x128xf32>
    %40 = arith.addf %37, %39 : vector<8x128xf32>
    %c0_31 = arith.constant 0 : index
    %c256_32 = arith.constant 256 : index
    %41 = vector.load %arg7[%c0_31, %c256_32] : memref<1x512xf32, #tpu.memory_space<vmem>>, vector<1x128xf32>
    %42 = vector.broadcast %41 : vector<1x128xf32> to vector<8x128xf32>
    %43 = arith.addf %40, %42 : vector<8x128xf32>
    %44 = math.tanh %43 : vector<8x128xf32>
    %45 = arith.mulf %19, %44 : vector<8x128xf32>
    %46 = arith.addf %35, %45 : vector<8x128xf32>
    %c0_33 = arith.constant 0 : index
    %c384 = arith.constant 384 : index
    %47 = vector.load %arg5[%c0_33, %c384] : memref<128x512xbf16, #tpu.memory_space<vmem>>, vector<128x128xbf16>
    %cst_34 = arith.constant dense<0.000000e+00> : vector<8x128xf32>
    %48 = tpu.matmul %1, %47, %cst_34 {dimension_numbers = #tpu.dot_dimension_numbers<[1], [0], [0], [1], [0, 0, 1, 1], [], []>} : vector<8x128xbf16>, vector<128x128xbf16>, vector<8x128xf32> -> vector<8x128xf32>
    %c0_35 = arith.constant 0 : index
    %c384_36 = arith.constant 384 : index
    %49 = vector.load %arg6[%c0_35, %c384_36] : memref<128x512xbf16, #tpu.memory_space<vmem>>, vector<128x128xbf16>
    %cst_37 = arith.constant dense<0.000000e+00> : vector<8x128xf32>
    %50 = tpu.matmul %4, %49, %cst_37 {dimension_numbers = #tpu.dot_dimension_numbers<[1], [0], [0], [1], [0, 0, 1, 1], [], []>} : vector<8x128xbf16>, vector<128x128xbf16>, vector<8x128xf32> -> vector<8x128xf32>
    %51 = arith.addf %48, %50 : vector<8x128xf32>
    %c0_38 = arith.constant 0 : index
    %c384_39 = arith.constant 384 : index
    %52 = vector.load %arg7[%c0_38, %c384_39] : memref<1x512xf32, #tpu.memory_space<vmem>>, vector<1x128xf32>
    %53 = vector.broadcast %52 : vector<1x128xf32> to vector<8x128xf32>
    %54 = arith.addf %51, %53 : vector<8x128xf32>
    %cst_40 = arith.constant 5.000000e-01 : f32
    %55 = vector.broadcast %cst_40 : f32 to vector<8x128xf32>
    %56 = arith.mulf %55, %54 : vector<8x128xf32>
    %57 = math.tanh %56 : vector<8x128xf32>
    %cst_41 = arith.constant 1.000000e+00 : f32
    %58 = vector.broadcast %cst_41 : f32 to vector<8x128xf32>
    %59 = arith.addf %57, %58 : vector<8x128xf32>
    %cst_42 = arith.constant 5.000000e-01 : f32
    %60 = vector.broadcast %cst_42 : f32 to vector<8x128xf32>
    %61 = arith.mulf %60, %59 : vector<8x128xf32>
    %62 = math.tanh %46 : vector<8x128xf32>
    %63 = arith.mulf %61, %62 : vector<8x128xf32>
    %cst_43 = arith.constant 1.000000e+00 : f32
    %64 = arith.subf %cst_43, %0 : f32
    %65 = vector.broadcast %64 : f32 to vector<8x128xf32>
    %66 = arith.mulf %65, %63 : vector<8x128xf32>
    %67 = vector.broadcast %0 : f32 to vector<8x128xf32>
    %68 = arith.mulf %67, %2 : vector<8x128xf32>
    %69 = arith.addf %66, %68 : vector<8x128xf32>
    %c0_44 = arith.constant 0 : index
    %c0_45 = arith.constant 0 : index
    %70 = vector.load %arg8[%c0_44, %c0_45] : memref<8x128xf32, #tpu.memory_space<vmem>>, vector<8x128xf32>
    tpu.vector_store %arg8[%c0_44, %c0_45], %69 {strides = array<i32>} : memref<8x128xf32, #tpu.memory_space<vmem>>, vector<8x128xf32>,
    %71 = vector.broadcast %64 : f32 to vector<8x128xf32>
    %72 = arith.mulf %71, %46 : vector<8x128xf32>
    %73 = vector.broadcast %0 : f32 to vector<8x128xf32>
    %74 = arith.mulf %73, %3 : vector<8x128xf32>
    %75 = arith.addf %72, %74 : vector<8x128xf32>
    %c0_46 = arith.constant 0 : index
    %c0_47 = arith.constant 0 : index
    %76 = vector.load %arg9[%c0_46, %c0_47] : memref<8x128xf32, #tpu.memory_space<vmem>>, vector<8x128xf32>
    tpu.vector_store %arg9[%c0_46, %c0_47], %75 {strides = array<i32>} : memref<8x128xf32, #tpu.memory_space<vmem>>, vector<8x128xf32>,
    return
  }
  func.func @transform_0(%arg0: i32) -> i32 {
    %c0_i32 = arith.constant 0 : i32
    %c0_i32_0 = arith.constant 0 : i32
    return %c0_i32 : i32
  }
  func.func @transform_1(%arg0: i32) -> (i32, i32) {
    %c0_i32 = arith.constant 0 : i32
    %c0_i32_0 = arith.constant 0 : i32
    return %arg0, %c0_i32 : i32, i32
  }
  func.func @transform_2(%arg0: i32) -> (i32, i32) {
    %c0_i32 = arith.constant 0 : i32
    %c0_i32_0 = arith.constant 0 : i32
    return %arg0, %c0_i32 : i32, i32
  }
  func.func @transform_3(%arg0: i32) -> (i32, i32) {
    %c0_i32 = arith.constant 0 : i32
    %c0_i32_0 = arith.constant 0 : i32
    return %arg0, %c0_i32 : i32, i32
  }
  func.func @transform_4(%arg0: i32) -> (i32, i32) {
    %c0_i32 = arith.constant 0 : i32
    %c0_i32_0 = arith.constant 0 : i32
    %c0_i32_1 = arith.constant 0 : i32
    return %c0_i32, %c0_i32_0 : i32, i32
  }
  func.func @transform_5(%arg0: i32) -> (i32, i32) {
    %c0_i32 = arith.constant 0 : i32
    %c0_i32_0 = arith.constant 0 : i32
    %c0_i32_1 = arith.constant 0 : i32
    return %c0_i32, %c0_i32_0 : i32, i32
  }
  func.func @transform_6(%arg0: i32) -> (i32, i32) {
    %c0_i32 = arith.constant 0 : i32
    %c0_i32_0 = arith.constant 0 : i32
    %c0_i32_1 = arith.constant 0 : i32
    return %c0_i32, %c0_i32_0 : i32, i32
  }
  func.func @transform_7(%arg0: i32) -> (i32, i32) {
    %c0_i32 = arith.constant 0 : i32
    %c0_i32_0 = arith.constant 0 : i32
    return %arg0, %c0_i32 : i32, i32
  }
  func.func @transform_8(%arg0: i32) -> (i32, i32) {
    %c0_i32 = arith.constant 0 : i32
    %c0_i32_0 = arith.constant 0 : i32
    return %arg0, %c0_i32 : i32, i32
  }
}

</mosaic_0001>

<llo_original>
// kernel: tpu_custom_call.1
$region0: #{tpu_custom_call.1}
  #allocation0 [shape = 'u32[]', space=smem, size = 0x4, offset = 0x4, fixed_abs, tag = 'smem constant byte address 0x4 - core index']
  #allocation1 [shape = 'u32[72,128]{1,0:T(1,128)}', space=vmem, size = 0x9000, scoped, tag = 'internal scratch']
  #allocation2 [shape = 'f32[1]{0:T(128)S(6)}', space=smem, size = 0x200, scoped, tag = 'scoped memory for tpu_custom_call.1']
  %s0 = inlined_call_operand.<no memory space> [shape: f32[1], index: 0, kind: input, shape index: {}]
  %s1 = inlined_call_operand.hbm [shape: bf16[8,128], index: 1, kind: input, shape index: {}]
  %s2 = inlined_call_operand.hbm [shape: f32[8,128], index: 2, kind: input, shape index: {}]
  %s3 = inlined_call_operand.hbm [shape: f32[8,128], index: 3, kind: input, shape index: {}]
  %s4 = inlined_call_operand.hbm [shape: bf16[128,512], index: 4, kind: input, shape index: {}]
  %s5 = inlined_call_operand.hbm [shape: bf16[128,512], index: 5, kind: input, shape index: {}]
  %s6 = inlined_call_operand.vmem [shape: f32[1,512], index: 6, kind: input, shape index: {}]
  %s7 = inlined_call_operand.hbm [shape: f32[8,128], index: 7, kind: output, shape index: {0}]
  %s8 = inlined_call_operand.hbm [shape: f32[8,128], index: 8, kind: output, shape index: {1}]
  %9 = xla_tuple %s7, %s8
  %s10 = sld [smem:[#allocation0]]
  $region66: #{tpu_custom_call.1} parent=0
    _
  %s12 = ssub.s32 1, %s10
  %s13 = scalar_select 0, %s12, %s10
  %14 = sst [smem:[#allocation2]] %s0
  $region1: #{tpu_custom_call.1} parent=0
    #allocation3 [shape = 'u8[2048]{0}', space=vmem, size = 0x800, scoped, tag = 'input window, operand 1, single buffered']
    #allocation4 [shape = 's32[1]{0}', space=sflag, size = 0x4, scoped, tag = 'scoped memory for tpu_custom_call.1']
    #allocation5 [shape = 's32[1]{0}', space=sflag, size = 0x4, scoped, tag = 'scoped memory for tpu_custom_call.1']
    #allocation6 [shape = 'u8[4096]{0}', space=vmem, size = 0x1000, scoped, tag = 'input window, operand 2, single buffered']
    #allocation7 [shape = 's32[1]{0}', space=sflag, size = 0x4, scoped, tag = 'scoped memory for tpu_custom_call.1']
    #allocation8 [shape = 'u8[4096]{0}', space=vmem, size = 0x1000, scoped, tag = 'input window, operand 3, single buffered']
    #allocation9 [shape = 'u8[131072]{0}', space=vmem, size = 0x20000, scoped, tag = 'input window, operand 4, single buffered']
    #allocation10 [shape = 's32[1]{0}', space=sflag, size = 0x4, scoped, tag = 'scoped memory for tpu_custom_call.1']
    #allocation11 [shape = 'u8[131072]{0}', space=vmem, size = 0x20000, scoped, tag = 'input window, operand 5, single buffered']
    #allocation12 [shape = 'u8[4096]{0}', space=vmem, size = 0x1000, scoped, tag = 'output window, operand 0, single buffered']
    #allocation13 [shape = 'u8[4096]{0}', space=vmem, size = 0x1000, scoped, tag = 'output window, operand 1, single buffered']
    #allocation14 [shape = 's32[1]{0}', space=sflag, size = 0x4, scoped, tag = 'scoped memory for tpu_custom_call.1']
    %15 = vsyncpa [#allocation4], 0
    %16 = vsyncpa [#allocation7], 0
    %17 = vsyncpa [#allocation10], 0
    %18 = vsyncpa [#allocation5], 0
    %19 = vsyncpa [#allocation14], 0
    // Predicated region
    $region2: #{tpu_custom_call.1} parent=1 // pred_check
      _
    $region3: #{tpu_custom_call.1} parent=1 // pred_check_branch
      %21 = sbr.rel (0) target = $region5
    $region4: #{tpu_custom_call.1} parent=1 // pred_region
      _
    $region5: #{tpu_custom_call.1} parent=1 // pred_fallthru
      _
    // Predicated region
    $region6: #{tpu_custom_call.1} parent=1 // pred_check
      _
    $region7: #{tpu_custom_call.1} parent=1 // pred_check_branch
      %23 = sbr.rel (0) target = $region9
    $region8: #{tpu_custom_call.1} parent=1 // pred_region
      %25 = vsyncadd [#allocation4], 0
      %s27 = sshll.u32 %s1, 4
      %s28 = int_to_ptr.hbm [resolvable:$true] %s27
      %s29 = sshll.u32 [#allocation3], 4
      %s30 = int_to_ptr.vmem [resolvable:$true] %s29
      %32 = dma.hbm_to_vmem [thread:$0]  %s28, 64, %s30, [#allocation4]
    $region9: #{tpu_custom_call.1} parent=1 // pred_fallthru
      _
    // Predicated region
    $region10: #{tpu_custom_call.1} parent=1 // pred_check
      _
    $region11: #{tpu_custom_call.1} parent=1 // pred_check_branch
      %34 = sbr.rel (0) target = $region13
    $region12: #{tpu_custom_call.1} parent=1 // pred_region
      %36 = vsyncadd [#allocation7], 0
      %s38 = sshll.u32 %s2, 4
      %s39 = int_to_ptr.hbm [resolvable:$true] %s38
      %s40 = sshll.u32 [#allocation6], 4
      %s41 = int_to_ptr.vmem [resolvable:$true] %s40
      %43 = dma.hbm_to_vmem [thread:$0]  %s39, 128, %s41, [#allocation7]
    $region13: #{tpu_custom_call.1} parent=1 // pred_fallthru
      _
    // Predicated region
    $region14: #{tpu_custom_call.1} parent=1 // pred_check
      _
    $region15: #{tpu_custom_call.1} parent=1 // pred_check_branch
      %45 = sbr.rel (0) target = $region17
    $region16: #{tpu_custom_call.1} parent=1 // pred_region
      %47 = vsyncadd [#allocation7], 0
      %s49 = sshll.u32 %s3, 4
      %s50 = int_to_ptr.hbm [resolvable:$true] %s49
      %s51 = sshll.u32 [#allocation8], 4
      %s52 = int_to_ptr.vmem [resolvable:$true] %s51
      %54 = dma.hbm_to_vmem [thread:$0]  %s50, 128, %s52, [#allocation7]
    $region17: #{tpu_custom_call.1} parent=1 // pred_fallthru
      _
    // Predicated region
    $region18: #{tpu_custom_call.1} parent=1 // pred_check
      _
    $region19: #{tpu_custom_call.1} parent=1 // pred_check_branch
      %56 = sbr.rel (0) target = $region21
    $region20: #{tpu_custom_call.1} parent=1 // pred_region
      %58 = vsyncadd [#allocation10], 0
      %s59 = sshll.u32 %s4, 4
      %s60 = int_to_ptr.hbm [resolvable:$true] %s59
      %s61 = sshll.u32 [#allocation9], 4
      %s62 = int_to_ptr.vmem [resolvable:$true] %s61
      %67 = dma.hbm_to_vmem [thread:$0]  %s60, 4096, %s62, [#allocation10], 256, 256, 16
    $region21: #{tpu_custom_call.1} parent=1 // pred_fallthru
      _
    // Predicated region
    $region22: #{tpu_custom_call.1} parent=1 // pred_check
      _
    $region23: #{tpu_custom_call.1} parent=1 // pred_check_branch
      %69 = sbr.rel (0) target = $region25
    $region24: #{tpu_custom_call.1} parent=1 // pred_region
      %71 = vsyncadd [#allocation10], 0
      %s72 = sshll.u32 %s5, 4
      %s73 = int_to_ptr.hbm [resolvable:$true] %s72
      %s74 = sshll.u32 [#allocation11], 4
      %s75 = int_to_ptr.vmem [resolvable:$true] %s74
      %80 = dma.hbm_to_vmem [thread:$0]  %s73, 4096, %s75, [#allocation10], 256, 256, 16
    $region25: #{tpu_custom_call.1} parent=1 // pred_fallthru
      _
    // Predicated region
    $region26: #{tpu_custom_call.1} parent=1 // pred_check
      _
    $region27: #{tpu_custom_call.1} parent=1 // pred_check_branch
      %82 = sbr.rel (0) target = $region29
    $region28: #{tpu_custom_call.1} parent=1 // pred_region
      _
    $region29: #{tpu_custom_call.1} parent=1 // pred_fallthru
      _
    // Predicated region
    $region30: #{tpu_custom_call.1} parent=1 // pred_check
      _
    $region31: #{tpu_custom_call.1} parent=1 // pred_check_branch
      %84 = sbr.rel (0) target = $region33
    $region32: #{tpu_custom_call.1} parent=1 // pred_region
      %86 = dma.done [#allocation4], 64
    $region33: #{tpu_custom_call.1} parent=1 // pred_fallthru
      _
    // Predicated region
    $region34: #{tpu_custom_call.1} parent=1 // pred_check
      _
    $region35: #{tpu_custom_call.1} parent=1 // pred_check_branch
      %88 = sbr.rel (0) target = $region37
    $region36: #{tpu_custom_call.1} parent=1 // pred_region
      %90 = dma.done [#allocation7], 128
    $region37: #{tpu_custom_call.1} parent=1 // pred_fallthru
      _
    // Predicated region
    $region38: #{tpu_custom_call.1} parent=1 // pred_check
      _
    $region39: #{tpu_custom_call.1} parent=1 // pred_check_branch
      %92 = sbr.rel (0) target = $region41
    $region40: #{tpu_custom_call.1} parent=1 // pred_region
      %94 = dma.done [#allocation7], 128
    $region41: #{tpu_custom_call.1} parent=1 // pred_fallthru
      _
    // Predicated region
    $region42: #{tpu_custom_call.1} parent=1 // pred_check
      _
    $region43: #{tpu_custom_call.1} parent=1 // pred_check_branch
      %96 = sbr.rel (0) target = $region45
    $region44: #{tpu_custom_call.1} parent=1 // pred_region
      %98 = dma.done [#allocation10], 4096
    $region45: #{tpu_custom_call.1} parent=1 // pred_fallthru
      _
    // Predicated region
    $region46: #{tpu_custom_call.1} parent=1 // pred_check
      _
    $region47: #{tpu_custom_call.1} parent=1 // pred_check_branch
      %100 = sbr.rel (0) target = $region49
    $region48: #{tpu_custom_call.1} parent=1 // pred_region
      %102 = dma.done [#allocation10], 4096
    $region49: #{tpu_custom_call.1} parent=1 // pred_fallthru
      _
    %s103 = sld [smem:[#allocation2]]
    %v104 = vld [vmem:[#allocation3] sm:$0xf]
    %v105 = vld [vmem:[#allocation6] sm:$0xff]
    %v106 = vld [vmem:[#allocation8] sm:$0xff]
    %v107 = vpack.c.bf16 %v105, %v105
    %v108 = vld [vmem:[#allocation9] sm:$0xf]
    %v109 = vld [vmem:[#allocation9 + $0x10] sm:$0xf]
    %v110 = vld [vmem:[#allocation9 + $0x20] sm:$0xf]
    %v111 = vld [vmem:[#allocation9 + $0x30] sm:$0xf]
    %v112 = vld [vmem:[#allocation9 + $0x40] sm:$0xf]
    %v113 = vld [vmem:[#allocation9 + $0x50] sm:$0xf]
    %v114 = vld [vmem:[#allocation9 + $0x60] sm:$0xf]
    %v115 = vld [vmem:[#allocation9 + $0x70] sm:$0xf]
    %v116 = vld [vmem:[#allocation9 + $0x80] sm:$0xf]
    %v117 = vld [vmem:[#allocation9 + $0x90] sm:$0xf]
    %v118 = vld [vmem:[#allocation9 + $0xa0] sm:$0xf]
    %v119 = vld [vmem:[#allocation9 + $0xb0] sm:$0xf]
    %v120 = vld [vmem:[#allocation9 + $0xc0] sm:$0xf]
    %v121 = vld [vmem:[#allocation9 + $0xd0] sm:$0xf]
    %v122 = vld [vmem:[#allocation9 + $0xe0] sm:$0xf]
    %v123 = vld [vmem:[#allocation9 + $0xf0] sm:$0xf]
    %v124 = vld [vmem:[#allocation11] sm:$0xf]
    %v125 = vld [vmem:[#allocation11 + $0x10] sm:$0xf]
    %v126 = vld [vmem:[#allocation11 + $0x20] sm:$0xf]
    %v127 = vld [vmem:[#allocation11 + $0x30] sm:$0xf]
    %v128 = vld [vmem:[#allocation11 + $0x40] sm:$0xf]
    %v129 = vld [vmem:[#allocation11 + $0x50] sm:$0xf]
    %v130 = vld [vmem:[#allocation11 + $0x60] sm:$0xf]
    %v131 = vld [vmem:[#allocation11 + $0x70] sm:$0xf]
    %v132 = vld [vmem:[#allocation11 + $0x80] sm:$0xf]
    %v133 = vld [vmem:[#allocation11 + $0x90] sm:$0xf]
    %v134 = vld [vmem:[#allocation11 + $0xa0] sm:$0xf]
    %v135 = vld [vmem:[#allocation11 + $0xb0] sm:$0xf]
    %v136 = vld [vmem:[#allocation11 + $0xc0] sm:$0xf]
    %v137 = vld [vmem:[#allocation11 + $0xd0] sm:$0xf]
    %v138 = vld [vmem:[#allocation11 + $0xe0] sm:$0xf]
    %v139 = vld [vmem:[#allocation11 + $0xf0] sm:$0xf]
    %v156 = vunpack.c.l.b16 %v124
    %v157 = vunpack.c.l.b16 %v125
    %v158 = vunpack.c.l.b16 %v126
    %v159 = vunpack.c.l.b16 %v127
    %v160 = vunpack.c.l.b16 %v128
    %v161 = vunpack.c.l.b16 %v129
    %v162 = vunpack.c.l.b16 %v130
    %v163 = vunpack.c.l.b16 %v131
    %v164 = vunpack.c.l.b16 %v132
    %v165 = vunpack.c.l.b16 %v133
    %v166 = vunpack.c.l.b16 %v134
    %v167 = vunpack.c.l.b16 %v135
    %v168 = vunpack.c.l.b16 %v136
    %v169 = vunpack.c.l.b16 %v137
    %v170 = vunpack.c.l.b16 %v138
    %v171 = vunpack.c.l.b16 %v139
    %v172 = vpack.c.b16 %v157, %v156
    %v173 = vpack.c.b16 %v159, %v158
    %v174 = vpack.c.b16 %v161, %v160
    %v175 = vpack.c.b16 %v163, %v162
    %v176 = vpack.c.b16 %v165, %v164
    %v177 = vpack.c.b16 %v167, %v166
    %v178 = vpack.c.b16 %v169, %v168
    %v179 = vpack.c.b16 %v171, %v170
    %188 = vmatpush.bf16.msra.mxu0 %v179
    %189 = vmatpush.bf16.msra.mxu0 %v178
    %190 = vmatpush.bf16.msra.mxu0 %v177
    %191 = vmatpush.bf16.msra.mxu0 %v176
    %192 = vmatpush.bf16.msra.mxu0 %v175
    %193 = vmatpush.bf16.msra.mxu0 %v174
    %194 = vmatpush.bf16.msra.mxu0 %v173
    %195 = vmatpush.bf16.msra.mxu0 %v172
    %196 = vmatmul.bf16.gmra.mxu0 %v107
    %v197 = vpop.f32.mrf.mxu0
    %v198 = vadd.f32 0.0, %v197
    %v199 = vpop.f32.mrf.mxu0
    %200 = vdwg.mxu0
    %v217 = vunpack.c.l.b16 %v108
    %v218 = vunpack.c.l.b16 %v109
    %v219 = vunpack.c.l.b16 %v110
    %v220 = vunpack.c.l.b16 %v111
    %v221 = vunpack.c.l.b16 %v112
    %v222 = vunpack.c.l.b16 %v113
    %v223 = vunpack.c.l.b16 %v114
    %v224 = vunpack.c.l.b16 %v115
    %v225 = vunpack.c.l.b16 %v116
    %v226 = vunpack.c.l.b16 %v117
    %v227 = vunpack.c.l.b16 %v118
    %v228 = vunpack.c.l.b16 %v119
    %v229 = vunpack.c.l.b16 %v120
    %v230 = vunpack.c.l.b16 %v121
    %v231 = vunpack.c.l.b16 %v122
    %v232 = vunpack.c.l.b16 %v123
    %v233 = vpack.c.b16 %v218, %v217
    %v234 = vpack.c.b16 %v220, %v219
    %v235 = vpack.c.b16 %v222, %v221
    %v236 = vpack.c.b16 %v224, %v223
    %v237 = vpack.c.b16 %v226, %v225
    %v238 = vpack.c.b16 %v228, %v227
    %v239 = vpack.c.b16 %v230, %v229
    %v240 = vpack.c.b16 %v232, %v231
    %249 = vmatpush.bf16.msra.mxu0 %v240
    %250 = vmatpush.bf16.msra.mxu0 %v239
    %251 = vmatpush.bf16.msra.mxu0 %v238
    %252 = vmatpush.bf16.msra.mxu0 %v237
    %253 = vmatpush.bf16.msra.mxu0 %v236
    %254 = vmatpush.bf16.msra.mxu0 %v235
    %255 = vmatpush.bf16.msra.mxu0 %v234
    %256 = vmatpush.bf16.msra.mxu0 %v233
    %257 = vmatmul.bf16.gmra.mxu0 %v104
    %v258 = vpop.f32.mrf.mxu0
    %v259 = vadd.f32 %v198, %v258
    %v260 = vpop.f32.mrf.mxu0
    %261 = vdwg.mxu0
    %v262 = vld [vmem:[%s6] sm:$0x1]
    %v264 = vperm.slane %v262, 0
    %v266 = vadd.f32 %v259, %v264
    %v267 = vmul.f32 %v266, 0.5
    %v268 = vtanh.pop %v267
    %v269 = vadd.f32 %v268, 1.0
    %v270 = vmul.f32 %v269, 0.5
    %v271 = vld [vmem:[#allocation9 + $0x4] sm:$0xf]
    %v272 = vld [vmem:[#allocation9 + $0x14] sm:$0xf]
    %v273 = vld [vmem:[#allocation9 + $0x24] sm:$0xf]
    %v274 = vld [vmem:[#allocation9 + $0x34] sm:$0xf]
    %v275 = vld [vmem:[#allocation9 + $0x44] sm:$0xf]
    %v276 = vld [vmem:[#allocation9 + $0x54] sm:$0xf]
    %v277 = vld [vmem:[#allocation9 + $0x64] sm:$0xf]
    %v278 = vld [vmem:[#allocation9 + $0x74] sm:$0xf]
    %v279 = vld [vmem:[#allocation9 + $0x84] sm:$0xf]
    %v280 = vld [vmem:[#allocation9 + $0x94] sm:$0xf]
    %v281 = vld [vmem:[#allocation9 + $0xa4] sm:$0xf]
    %v282 = vld [vmem:[#allocation9 + $0xb4] sm:$0xf]
    %v283 = vld [vmem:[#allocation9 + $0xc4] sm:$0xf]
    %v284 = vld [vmem:[#allocation9 + $0xd4] sm:$0xf]
    %v285 = vld [vmem:[#allocation9 + $0xe4] sm:$0xf]
    %v286 = vld [vmem:[#allocation9 + $0xf4] sm:$0xf]
    %v287 = vld [vmem:[#allocation11 + $0x4] sm:$0xf]
    %v288 = vld [vmem:[#allocation11 + $0x14] sm:$0xf]
    %v289 = vld [vmem:[#allocation11 + $0x24] sm:$0xf]
    %v290 = vld [vmem:[#allocation11 + $0x34] sm:$0xf]
    %v291 = vld [vmem:[#allocation11 + $0x44] sm:$0xf]
    %v292 = vld [vmem:[#allocation11 + $0x54] sm:$0xf]
    %v293 = vld [vmem:[#allocation11 + $0x64] sm:$0xf]
    %v294 = vld [vmem:[#allocation11 + $0x74] sm:$0xf]
    %v295 = vld [vmem:[#allocation11 + $0x84] sm:$0xf]
    %v296 = vld [vmem:[#allocation11 + $0x94] sm:$0xf]
    %v297 = vld [vmem:[#allocation11 + $0xa4] sm:$0xf]
    %v298 = vld [vmem:[#allocation11 + $0xb4] sm:$0xf]
    %v299 = vld [vmem:[#allocation11 + $0xc4] sm:$0xf]
    %v300 = vld [vmem:[#allocation11 + $0xd4] sm:$0xf]
    %v301 = vld [vmem:[#allocation11 + $0xe4] sm:$0xf]
    %v302 = vld [vmem:[#allocation11 + $0xf4] sm:$0xf]
    %v319 = vunpack.c.l.b16 %v287
    %v320 = vunpack.c.l.b16 %v288
    %v321 = vunpack.c.l.b16 %v289
    %v322 = vunpack.c.l.b16 %v290
    %v323 = vunpack.c.l.b16 %v291
    %v324 = vunpack.c.l.b16 %v292
    %v325 = vunpack.c.l.b16 %v293
    %v326 = vunpack.c.l.b16 %v294
    %v327 = vunpack.c.l.b16 %v295
    %v328 = vunpack.c.l.b16 %v296
    %v329 = vunpack.c.l.b16 %v297
    %v330 = vunpack.c.l.b16 %v298
    %v331 = vunpack.c.l.b16 %v299
    %v332 = vunpack.c.l.b16 %v300
    %v333 = vunpack.c.l.b16 %v301
    %v334 = vunpack.c.l.b16 %v302
    %v335 = vpack.c.b16 %v320, %v319
    %v336 = vpack.c.b16 %v322, %v321
    %v337 = vpack.c.b16 %v324, %v323
    %v338 = vpack.c.b16 %v326, %v325
    %v339 = vpack.c.b16 %v328, %v327
    %v340 = vpack.c.b16 %v330, %v329
    %v341 = vpack.c.b16 %v332, %v331
    %v342 = vpack.c.b16 %v334, %v333
    %351 = vmatpush.bf16.msra.mxu0 %v342
    %352 = vmatpush.bf16.msra.mxu0 %v341
    %353 = vmatpush.bf16.msra.mxu0 %v340
    %354 = vmatpush.bf16.msra.mxu0 %v339
    %355 = vmatpush.bf16.msra.mxu0 %v338
    %356 = vmatpush.bf16.msra.mxu0 %v337
    %357 = vmatpush.bf16.msra.mxu0 %v336
    %358 = vmatpush.bf16.msra.mxu0 %v335
    %359 = vmatmul.bf16.gmra.mxu0 %v107
    %v360 = vpop.f32.mrf.mxu0
    %v361 = vadd.f32 0.0, %v360
    %v362 = vpop.f32.mrf.mxu0
    %363 = vdwg.mxu0
    %v380 = vunpack.c.l.b16 %v271
    %v381 = vunpack.c.l.b16 %v272
    %v382 = vunpack.c.l.b16 %v273
    %v383 = vunpack.c.l.b16 %v274
    %v384 = vunpack.c.l.b16 %v275
    %v385 = vunpack.c.l.b16 %v276
    %v386 = vunpack.c.l.b16 %v277
    %v387 = vunpack.c.l.b16 %v278
    %v388 = vunpack.c.l.b16 %v279
    %v389 = vunpack.c.l.b16 %v280
    %v390 = vunpack.c.l.b16 %v281
    %v391 = vunpack.c.l.b16 %v282
    %v392 = vunpack.c.l.b16 %v283
    %v393 = vunpack.c.l.b16 %v284
    %v394 = vunpack.c.l.b16 %v285
    %v395 = vunpack.c.l.b16 %v286
    %v396 = vpack.c.b16 %v381, %v380
    %v397 = vpack.c.b16 %v383, %v382
    %v398 = vpack.c.b16 %v385, %v384
    %v399 = vpack.c.b16 %v387, %v386
    %v400 = vpack.c.b16 %v389, %v388
    %v401 = vpack.c.b16 %v391, %v390
    %v402 = vpack.c.b16 %v393, %v392
    %v403 = vpack.c.b16 %v395, %v394
    %412 = vmatpush.bf16.msra.mxu0 %v403
    %413 = vmatpush.bf16.msra.mxu0 %v402
    %414 = vmatpush.bf16.msra.mxu0 %v401
    %415 = vmatpush.bf16.msra.mxu0 %v400
    %416 = vmatpush.bf16.msra.mxu0 %v399
    %417 = vmatpush.bf16.msra.mxu0 %v398
    %418 = vmatpush.bf16.msra.mxu0 %v397
    %419 = vmatpush.bf16.msra.mxu0 %v396
    %420 = vmatmul.bf16.gmra.mxu0 %v104
    %v421 = vpop.f32.mrf.mxu0
    %v422 = vadd.f32 %v361, %v421
    %v423 = vpop.f32.mrf.mxu0
    %424 = vdwg.mxu0
    %v425 = vld [vmem:[%s6 + $0x1] sm:$0x1]
    %v427 = vperm.slane %v425, 0
    %v429 = vadd.f32 %v422, %v427
    %v430 = vmul.f32 %v429, 0.5
    %v431 = vtanh.pop %v430
    %v432 = vadd.f32 %v431, 1.0
    %v433 = vmul.f32 %v432, 0.5
    %v434 = vmul.f32 %v433, %v106
    %v435 = vld [vmem:[#allocation9 + $0x8] sm:$0xf]
    %v436 = vld [vmem:[#allocation9 + $0x18] sm:$0xf]
    %v437 = vld [vmem:[#allocation9 + $0x28] sm:$0xf]
    %v438 = vld [vmem:[#allocation9 + $0x38] sm:$0xf]
    %v439 = vld [vmem:[#allocation9 + $0x48] sm:$0xf]
    %v440 = vld [vmem:[#allocation9 + $0x58] sm:$0xf]
    %v441 = vld [vmem:[#allocation9 + $0x68] sm:$0xf]
    %v442 = vld [vmem:[#allocation9 + $0x78] sm:$0xf]
    %v443 = vld [vmem:[#allocation9 + $0x88] sm:$0xf]
    %v444 = vld [vmem:[#allocation9 + $0x98] sm:$0xf]
    %v445 = vld [vmem:[#allocation9 + $0xa8] sm:$0xf]
    %v446 = vld [vmem:[#allocation9 + $0xb8] sm:$0xf]
    %v447 = vld [vmem:[#allocation9 + $0xc8] sm:$0xf]
    %v448 = vld [vmem:[#allocation9 + $0xd8] sm:$0xf]
    %v449 = vld [vmem:[#allocation9 + $0xe8] sm:$0xf]
    %v450 = vld [vmem:[#allocation9 + $0xf8] sm:$0xf]
    %v451 = vld [vmem:[#allocation11 + $0x8] sm:$0xf]
    %v452 = vld [vmem:[#allocation11 + $0x18] sm:$0xf]
    %v453 = vld [vmem:[#allocation11 + $0x28] sm:$0xf]
    %v454 = vld [vmem:[#allocation11 + $0x38] sm:$0xf]
    %v455 = vld [vmem:[#allocation11 + $0x48] sm:$0xf]
    %v456 = vld [vmem:[#allocation11 + $0x58] sm:$0xf]
    %v457 = vld [vmem:[#allocation11 + $0x68] sm:$0xf]
    %v458 = vld [vmem:[#allocation11 + $0x78] sm:$0xf]
    %v459 = vld [vmem:[#allocation11 + $0x88] sm:$0xf]
    %v460 = vld [vmem:[#allocation11 + $0x98] sm:$0xf]
    %v461 = vld [vmem:[#allocation11 + $0xa8] sm:$0xf]
    %v462 = vld [vmem:[#allocation11 + $0xb8] sm:$0xf]
    %v463 = vld [vmem:[#allocation11 + $0xc8] sm:$0xf]
    %v464 = vld [vmem:[#allocation11 + $0xd8] sm:$0xf]
    %v465 = vld [vmem:[#allocation11 + $0xe8] sm:$0xf]
    %v466 = vld [vmem:[#allocation11 + $0xf8] sm:$0xf]
    %v483 = vunpack.c.l.b16 %v451
    %v484 = vunpack.c.l.b16 %v452
    %v485 = vunpack.c.l.b16 %v453
    %v486 = vunpack.c.l.b16 %v454
    %v487 = vunpack.c.l.b16 %v455
    %v488 = vunpack.c.l.b16 %v456
    %v489 = vunpack.c.l.b16 %v457
    %v490 = vunpack.c.l.b16 %v458
    %v491 = vunpack.c.l.b16 %v459
    %v492 = vunpack.c.l.b16 %v460
    %v493 = vunpack.c.l.b16 %v461
    %v494 = vunpack.c.l.b16 %v462
    %v495 = vunpack.c.l.b16 %v463
    %v496 = vunpack.c.l.b16 %v464
    %v497 = vunpack.c.l.b16 %v465
    %v498 = vunpack.c.l.b16 %v466
    %v499 = vpack.c.b16 %v484, %v483
    %v500 = vpack.c.b16 %v486, %v485
    %v501 = vpack.c.b16 %v488, %v487
    %v502 = vpack.c.b16 %v490, %v489
    %v503 = vpack.c.b16 %v492, %v491
    %v504 = vpack.c.b16 %v494, %v493
    %v505 = vpack.c.b16 %v496, %v495
    %v506 = vpack.c.b16 %v498, %v497
    %515 = vmatpush.bf16.msra.mxu0 %v506
    %516 = vmatpush.bf16.msra.mxu0 %v505
    %517 = vmatpush.bf16.msra.mxu0 %v504
    %518 = vmatpush.bf16.msra.mxu0 %v503
    %519 = vmatpush.bf16.msra.mxu0 %v502
    %520 = vmatpush.bf16.msra.mxu0 %v501
    %521 = vmatpush.bf16.msra.mxu0 %v500
    %522 = vmatpush.bf16.msra.mxu0 %v499
    %523 = vmatmul.bf16.gmra.mxu0 %v107
    %v524 = vpop.f32.mrf.mxu0
    %v525 = vadd.f32 0.0, %v524
    %v526 = vpop.f32.mrf.mxu0
    %527 = vdwg.mxu0
    %v544 = vunpack.c.l.b16 %v435
    %v545 = vunpack.c.l.b16 %v436
    %v546 = vunpack.c.l.b16 %v437
    %v547 = vunpack.c.l.b16 %v438
    %v548 = vunpack.c.l.b16 %v439
    %v549 = vunpack.c.l.b16 %v440
    %v550 = vunpack.c.l.b16 %v441
    %v551 = vunpack.c.l.b16 %v442
    %v552 = vunpack.c.l.b16 %v443
    %v553 = vunpack.c.l.b16 %v444
    %v554 = vunpack.c.l.b16 %v445
    %v555 = vunpack.c.l.b16 %v446
    %v556 = vunpack.c.l.b16 %v447
    %v557 = vunpack.c.l.b16 %v448
    %v558 = vunpack.c.l.b16 %v449
    %v559 = vunpack.c.l.b16 %v450
    %v560 = vpack.c.b16 %v545, %v544
    %v561 = vpack.c.b16 %v547, %v546
    %v562 = vpack.c.b16 %v549, %v548
    %v563 = vpack.c.b16 %v551, %v550
    %v564 = vpack.c.b16 %v553, %v552
    %v565 = vpack.c.b16 %v555, %v554
    %v566 = vpack.c.b16 %v557, %v556
    %v567 = vpack.c.b16 %v559, %v558
    %576 = vmatpush.bf16.msra.mxu0 %v567
    %577 = vmatpush.bf16.msra.mxu0 %v566
    %578 = vmatpush.bf16.msra.mxu0 %v565
    %579 = vmatpush.bf16.msra.mxu0 %v564
    %580 = vmatpush.bf16.msra.mxu0 %v563
    %581 = vmatpush.bf16.msra.mxu0 %v562
    %582 = vmatpush.bf16.msra.mxu0 %v561
    %583 = vmatpush.bf16.msra.mxu0 %v560
    %584 = vmatmul.bf16.gmra.mxu0 %v104
    %v585 = vpop.f32.mrf.mxu0
    %v586 = vadd.f32 %v525, %v585
    %v587 = vpop.f32.mrf.mxu0
    %588 = vdwg.mxu0
    %v589 = vld [vmem:[%s6 + $0x2] sm:$0x1]
    %v591 = vperm.slane %v589, 0
    %v593 = vadd.f32 %v586, %v591
    %v594 = vtanh.pop %v593
    %v595 = vmul.f32 %v270, %v594
    %v596 = vadd.f32 %v434, %v595
    %v597 = vld [vmem:[#allocation9 + $0xc] sm:$0xf]
    %v598 = vld [vmem:[#allocation9 + $0x1c] sm:$0xf]
    %v599 = vld [vmem:[#allocation9 + $0x2c] sm:$0xf]
    %v600 = vld [vmem:[#allocation9 + $0x3c] sm:$0xf]
    %v601 = vld [vmem:[#allocation9 + $0x4c] sm:$0xf]
    %v602 = vld [vmem:[#allocation9 + $0x5c] sm:$0xf]
    %v603 = vld [vmem:[#allocation9 + $0x6c] sm:$0xf]
    %v604 = vld [vmem:[#allocation9 + $0x7c] sm:$0xf]
    %v605 = vld [vmem:[#allocation9 + $0x8c] sm:$0xf]
    %v606 = vld [vmem:[#allocation9 + $0x9c] sm:$0xf]
    %v607 = vld [vmem:[#allocation9 + $0xac] sm:$0xf]
    %v608 = vld [vmem:[#allocation9 + $0xbc] sm:$0xf]
    %v609 = vld [vmem:[#allocation9 + $0xcc] sm:$0xf]
    %v610 = vld [vmem:[#allocation9 + $0xdc] sm:$0xf]
    %v611 = vld [vmem:[#allocation9 + $0xec] sm:$0xf]
    %v612 = vld [vmem:[#allocation9 + $0xfc] sm:$0xf]
    %v613 = vld [vmem:[#allocation11 + $0xc] sm:$0xf]
    %v614 = vld [vmem:[#allocation11 + $0x1c] sm:$0xf]
    %v615 = vld [vmem:[#allocation11 + $0x2c] sm:$0xf]
    %v616 = vld [vmem:[#allocation11 + $0x3c] sm:$0xf]
    %v617 = vld [vmem:[#allocation11 + $0x4c] sm:$0xf]
    %v618 = vld [vmem:[#allocation11 + $0x5c] sm:$0xf]
    %v619 = vld [vmem:[#allocation11 + $0x6c] sm:$0xf]
    %v620 = vld [vmem:[#allocation11 + $0x7c] sm:$0xf]
    %v621 = vld [vmem:[#allocation11 + $0x8c] sm:$0xf]
    %v622 = vld [vmem:[#allocation11 + $0x9c] sm:$0xf]
    %v623 = vld [vmem:[#allocation11 + $0xac] sm:$0xf]
    %v624 = vld [vmem:[#allocation11 + $0xbc] sm:$0xf]
    %v625 = vld [vmem:[#allocation11 + $0xcc] sm:$0xf]
    %v626 = vld [vmem:[#allocation11 + $0xdc] sm:$0xf]
    %v627 = vld [vmem:[#allocation11 + $0xec] sm:$0xf]
    %v628 = vld [vmem:[#allocation11 + $0xfc] sm:$0xf]
    %v645 = vunpack.c.l.b16 %v613
    %v646 = vunpack.c.l.b16 %v614
    %v647 = vunpack.c.l.b16 %v615
    %v648 = vunpack.c.l.b16 %v616
    %v649 = vunpack.c.l.b16 %v617
    %v650 = vunpack.c.l.b16 %v618
    %v651 = vunpack.c.l.b16 %v619
    %v652 = vunpack.c.l.b16 %v620
    %v653 = vunpack.c.l.b16 %v621
    %v654 = vunpack.c.l.b16 %v622
    %v655 = vunpack.c.l.b16 %v623
    %v656 = vunpack.c.l.b16 %v624
    %v657 = vunpack.c.l.b16 %v625
    %v658 = vunpack.c.l.b16 %v626
    %v659 = vunpack.c.l.b16 %v627
    %v660 = vunpack.c.l.b16 %v628
    %v661 = vpack.c.b16 %v646, %v645
    %v662 = vpack.c.b16 %v648, %v647
    %v663 = vpack.c.b16 %v650, %v649
    %v664 = vpack.c.b16 %v652, %v651
    %v665 = vpack.c.b16 %v654, %v653
    %v666 = vpack.c.b16 %v656, %v655
    %v667 = vpack.c.b16 %v658, %v657
    %v668 = vpack.c.b16 %v660, %v659
    %677 = vmatpush.bf16.msra.mxu0 %v668
    %678 = vmatpush.bf16.msra.mxu0 %v667
    %679 = vmatpush.bf16.msra.mxu0 %v666
    %680 = vmatpush.bf16.msra.mxu0 %v665
    %681 = vmatpush.bf16.msra.mxu0 %v664
    %682 = vmatpush.bf16.msra.mxu0 %v663
    %683 = vmatpush.bf16.msra.mxu0 %v662
    %684 = vmatpush.bf16.msra.mxu0 %v661
    %685 = vmatmul.bf16.gmra.mxu0 %v107
    %v686 = vpop.f32.mrf.mxu0
    %v687 = vadd.f32 0.0, %v686
    %v688 = vpop.f32.mrf.mxu0
    %689 = vdwg.mxu0
    %v706 = vunpack.c.l.b16 %v597
    %v707 = vunpack.c.l.b16 %v598
    %v708 = vunpack.c.l.b16 %v599
    %v709 = vunpack.c.l.b16 %v600
    %v710 = vunpack.c.l.b16 %v601
    %v711 = vunpack.c.l.b16 %v602
    %v712 = vunpack.c.l.b16 %v603
    %v713 = vunpack.c.l.b16 %v604
    %v714 = vunpack.c.l.b16 %v605
    %v715 = vunpack.c.l.b16 %v606
    %v716 = vunpack.c.l.b16 %v607
    %v717 = vunpack.c.l.b16 %v608
    %v718 = vunpack.c.l.b16 %v609
    %v719 = vunpack.c.l.b16 %v610
    %v720 = vunpack.c.l.b16 %v611
    %v721 = vunpack.c.l.b16 %v612
    %v722 = vpack.c.b16 %v707, %v706
    %v723 = vpack.c.b16 %v709, %v708
    %v724 = vpack.c.b16 %v711, %v710
    %v725 = vpack.c.b16 %v713, %v712
    %v726 = vpack.c.b16 %v715, %v714
    %v727 = vpack.c.b16 %v717, %v716
    %v728 = vpack.c.b16 %v719, %v718
    %v729 = vpack.c.b16 %v721, %v720
    %738 = vmatpush.bf16.msra.mxu0 %v729
    %739 = vmatpush.bf16.msra.mxu0 %v728
    %740 = vmatpush.bf16.msra.mxu0 %v727
    %741 = vmatpush.bf16.msra.mxu0 %v726
    %742 = vmatpush.bf16.msra.mxu0 %v725
    %743 = vmatpush.bf16.msra.mxu0 %v724
    %744 = vmatpush.bf16.msra.mxu0 %v723
    %745 = vmatpush.bf16.msra.mxu0 %v722
    %746 = vmatmul.bf16.gmra.mxu0 %v104
    %v747 = vpop.f32.mrf.mxu0
    %v748 = vadd.f32 %v687, %v747
    %v749 = vpop.f32.mrf.mxu0
    %750 = vdwg.mxu0
    %v751 = vld [vmem:[%s6 + $0x3] sm:$0x1]
    %v753 = vperm.slane %v751, 0
    %v755 = vadd.f32 %v748, %v753
    %v756 = vmul.f32 %v755, 0.5
    %v757 = vtanh.pop %v756
    %v758 = vadd.f32 %v757, 1.0
    %v759 = vmul.f32 %v758, 0.5
    %v760 = vtanh.pop %v596
    %v761 = vmul.f32 %v759, %v760
    %s762 = ssub.f32 1.0, %s103
    %v763 = vstv %s762
    %v764 = vmul.f32 %v763, %v761
    %v765 = vstv %s103
    %v766 = vmul.f32 %v765, %v105
    %v767 = vadd.f32 %v764, %v766
    %768 = vst [vmem:[#allocation12] sm:$0xff] %v767
    %v769 = vmul.f32 %v763, %v596
    %v770 = vmul.f32 %v765, %v106
    %v771 = vadd.f32 %v769, %v770
    %772 = vst [vmem:[#allocation13] sm:$0xff] %v771
    // Predicated region
    $region50: #{tpu_custom_call.1} parent=1 // pred_check
      _
    $region51: #{tpu_custom_call.1} parent=1 // pred_check_branch
      %774 = sbr.rel (0) target = $region53
    $region52: #{tpu_custom_call.1} parent=1 // pred_region
      %776 = vsyncadd [#allocation5], 0
      %s778 = sshll.u32 [#allocation12], 4
      %s779 = int_to_ptr.vmem [resolvable:$true] %s778
      %s780 = sshll.u32 %s7, 4
      %s781 = int_to_ptr.hbm [resolvable:$true] %s780
      %783 = dma.vmem_to_hbm [thread:$0]  %s779, 128, %s781, [#allocation5]
    $region53: #{tpu_custom_call.1} parent=1 // pred_fallthru
      _
    // Predicated region
    $region54: #{tpu_custom_call.1} parent=1 // pred_check
      _
    $region55: #{tpu_custom_call.1} parent=1 // pred_check_branch
      %785 = sbr.rel (0) target = $region57
    $region56: #{tpu_custom_call.1} parent=1 // pred_region
      %787 = vsyncadd [#allocation14], 0
      %s789 = sshll.u32 [#allocation13], 4
      %s790 = int_to_ptr.vmem [resolvable:$true] %s789
      %s791 = sshll.u32 %s8, 4
      %s792 = int_to_ptr.hbm [resolvable:$true] %s791
      %794 = dma.vmem_to_hbm [thread:$0]  %s790, 128, %s792, [#allocation14]
    $region57: #{tpu_custom_call.1} parent=1 // pred_fallthru
      _
    // Predicated region
    $region58: #{tpu_custom_call.1} parent=1 // pred_check
      _
    $region59: #{tpu_custom_call.1} parent=1 // pred_check_branch
      %796 = sbr.rel (0) target = $region61
    $region60: #{tpu_custom_call.1} parent=1 // pred_region
      %798 = dma.done [#allocation5], 128
    $region61: #{tpu_custom_call.1} parent=1 // pred_fallthru
      _
    // Predicated region
    $region62: #{tpu_custom_call.1} parent=1 // pred_check
      _
    $region63: #{tpu_custom_call.1} parent=1 // pred_check_branch
      %800 = sbr.rel (0) target = $region65
    $region64: #{tpu_custom_call.1} parent=1 // pred_region
      %802 = dma.done [#allocation14], 128
    $region65: #{tpu_custom_call.1} parent=1 // pred_fallthru
      _
    %803 = vsyncpa [#allocation4], 1
    %804 = vsyncpa [#allocation7], 1
    %805 = vsyncpa [#allocation10], 1
    %806 = vsyncpa [#allocation5], 1
    %807 = vsyncpa [#allocation14], 1

</llo_original>
